<compile_context>
chip_gen: v5e
topology: v5e:2x2
jax: 0.10.0
libtpu: 0.0.40
codegen_flags: <defaults>
</compile_context>

<pallas_src>
import jax
import jax.numpy as jnp
from jax.experimental import pallas as pl
from jax.experimental.pallas import tpu as pltpu


# ---------------------------------------------------------------------------
# Kernel
# ---------------------------------------------------------------------------
def _make_attention_kernel(heads, dim_head):
    hidden = heads * dim_head

    def kernel(x_kv_ref, x_q_ref, wq_ref, wk_ref, wv_ref, wout_ref, o_ref,
               k_sc, v_sc):
        # x_kv_ref: (bt, N, dim)        full sequence (K/V source)
        # x_q_ref : (bt, qt, dim)       this query tile
        # wq/wk/wv: (dim, hidden)       wq already carries the 1/sqrt(dh) scale
        # wout    : (hidden, dim)
        # k_sc/v_sc: (heads, bt, N, dh) head-major K/V cache (input dtype)
        j = pl.program_id(1)
        bt, n_kv, dim = x_kv_ref.shape
        qt = x_q_ref.shape[1]
        in_dtype = x_q_ref.dtype

        # ---- K/V projection: single 2-D matmuls with M = bt*N, run once per
        # batch block (query-tile 0) and cached head-major in VMEM scratch so
        # the per-head extraction is paid once, not per query tile / per use.
        @pl.when(j == 0)
        def _():
            xkv2 = x_kv_ref[...].reshape(bt * n_kv, dim)
            k2 = jnp.dot(xkv2, wk_ref[...], preferred_element_type=jnp.float32)
            v2 = jnp.dot(xkv2, wv_ref[...], preferred_element_type=jnp.float32)
            for h in range(heads):
                sl = slice(h * dim_head, (h + 1) * dim_head)
                k_sc[h] = k2[:, sl].reshape(bt, n_kv, dim_head).astype(k_sc.dtype)
                v_sc[h] = v2[:, sl].reshape(bt, n_kv, dim_head).astype(v_sc.dtype)

        # ---- Q projection for this query tile (M = bt*qt); scale already
        # folded into wq on the host.
        xq2 = x_q_ref[...].reshape(bt * qt, dim)
        q2 = jnp.dot(xq2, wq_ref[...], preferred_element_type=jnp.float32)

        # ---- Per-head attention.  `heads` is small & static -> unrolls.
        o_parts = []
        for h in range(heads):
            sl = slice(h * dim_head, (h + 1) * dim_head)
            q_h = q2[:, sl].reshape(bt, qt, dim_head).astype(in_dtype)
            k_h = k_sc[h]                       # (bt, N, dh) leading-axis select
            v_h = v_sc[h]

            sim = jnp.einsum('bqd,bkd->bqk', q_h, k_h,
                             preferred_element_type=jnp.float32)   # f32 scores
            m = jnp.max(sim, axis=-1, keepdims=True)               # f32 stats
            p = jnp.exp(sim - m)
            denom = jnp.sum(p, axis=-1, keepdims=True)

            o_h = jnp.einsum('bqk,bkd->bqd', p.astype(v_h.dtype), v_h,
                             preferred_element_type=jnp.float32)   # (bt, qt, dh)
            # Deferred normalization: an O(qt*dh) multiply + EUP reciprocal
            # instead of an O(qt*N) divide of the probabilities.
            o_parts.append(o_h * pl.reciprocal(denom, approx=True))

        # ---- Single output projection: one K = hidden matmul for all heads.
        out = jnp.concatenate(o_parts, axis=-1)             # (bt, qt, hidden) f32
        out2 = out.reshape(bt * qt, hidden).astype(in_dtype)
        o2 = jnp.dot(out2, wout_ref[...], preferred_element_type=jnp.float32)
        o_ref[...] = o2.reshape(bt, qt, o_ref.shape[-1]).astype(o_ref.dtype)

    return kernel


# ---------------------------------------------------------------------------
# VMEM budgeting / tile selection (generation-aware)
# ---------------------------------------------------------------------------
def _vmem_limit_bytes():
    cap = 64 * 1024 * 1024                      # conservative default: v7x per-core VMEM
    try:
        cap = int(pltpu.get_tpu_info().vmem_capacity_bytes)
    except Exception:
        pass
    # ~48 MiB on v7x (64 MiB physical), ~96-100 MiB on v5e/v6e (128 MiB).
    return min((cap * 3) // 4, 100 * 1024 * 1024)


def _vmem_footprint(bt, qt, N, dim, hidden, heads, itemsize):
    """Estimate of the fused working set, counting Pallas double-buffering."""
    f32 = 4
    weights = 2 * (3 * dim * hidden + hidden * dim) * itemsize      # 2x buffered
    io = 2 * (bt * N * dim + 2 * bt * qt * dim) * itemsize          # x_kv + x_q + out, 2x
    kv_scratch = 2 * bt * N * hidden * itemsize                     # K & V cache
    intermediates = (2 * bt * N * hidden * f32                      # k2/v2 f32 (j == 0)
                     + 2 * bt * heads * qt * N * f32                # sim and p
                     + 3 * bt * qt * hidden * f32)                  # q proj, out_h, proj acc
    return weights + io + kv_scratch + intermediates


def _pick_q_tile(N, cap=512):
    """Full N when small; else the largest divisor of N that is a multiple of 8
    and <= cap (keeps the (8,128) block rule and enables pipelining)."""
    if N <= cap:
        return N
    for qt in range(cap, 7, -1):
        if N % qt == 0 and qt % 8 == 0:
            return qt
    return N


def _pick_b_tile(B, N, q_tile, dim, hidden, heads, itemsize, budget):
    divisors = [d for d in range(1, B + 1) if B % d == 0]
    fitting = [d for d in divisors
               if _vmem_footprint(d, q_tile, N, dim, hidden, heads, itemsize) <= budget]
    if not fitting:
        # TODO(synk): flash-style KV-tiled variant (online max/sum over kv tiles,
        # pattern P3) for sequences whose score matrix does not fit in VMEM.
        raise NotImplementedError(
            "Attention working set exceeds the VMEM budget even at b_tile=1; "
            "a flash-style KV-tiled kernel is required for this shape.")
    n_q = N // q_tile
    multi = [d for d in fitting if (B // d) * n_q >= 2]   # keep >=2 grid steps (megacore)
    pool = multi if multi else fitting
    return max(pool)


# ---------------------------------------------------------------------------
# Wrapper
# ---------------------------------------------------------------------------
def attention_pallas(x, w_qkv, w_out, *, heads=4, dim_head=32,
                     b_tile=None, q_tile=None,
                     pos_bias=None, focus_present_mask=None):
    """Forward pass of unet3d.Attention (default path: rotary_emb=None).

    x:     (B, N, dim)
    w_qkv: (dim, 3*heads*dim_head)   -- to_qkv weight, applied as x @ w_qkv
    w_out: (heads*dim_head, dim)     -- to_out weight, applied as h @ w_out
    """
    # TODO(synk): pos_bias addition, focus_present_mask masking branches and
    # rotary_emb rotation (all None in the default forward call) are not
    # implemented inside the Pallas kernel.
    assert pos_bias is None and focus_present_mask is None

    B, N, dim = x.shape
    hidden = heads * dim_head
    assert w_qkv.shape == (dim, 3 * hidden)
    assert w_out.shape == (hidden, dim)

    dtype = x.dtype
    scale = dim_head ** -0.5
    # Host-side weight prep (one-time transforms, not per-element kernel work):
    # split q/k/v along lane-aligned (hidden-wide) column blocks and fold the
    # softmax scale into wq.  MXU operands stay in the input dtype.
    wq = (w_qkv[:, :hidden] * scale).astype(dtype)
    wk = w_qkv[:, hidden:2 * hidden].astype(dtype)
    wv = w_qkv[:, 2 * hidden:].astype(dtype)
    w_out = w_out.astype(dtype)

    itemsize = jnp.dtype(dtype).itemsize
    vmem_limit = _vmem_limit_bytes()
    budget = (vmem_limit * 7) // 10            # headroom for compiler temporaries

    if q_tile is None:
        q_tile = _pick_q_tile(N)
    assert N % q_tile == 0
    if b_tile is None:
        b_tile = _pick_b_tile(B, N, q_tile, dim, hidden, heads, itemsize, budget)
    assert B % b_tile == 0
    if _vmem_footprint(b_tile, q_tile, N, dim, hidden, heads, itemsize) > budget:
        raise NotImplementedError(
            "Requested tiling exceeds the VMEM budget; see flash-tiling TODO.")

    kernel = _make_attention_kernel(heads, dim_head)
    grid = (B // b_tile, N // q_tile)

    # TODO(synk): when dim % 128 != 0 a lane-dense flattened (B, N*dim) out_spec
    # would avoid masked stores; kept 3-D here so the block shape stays valid
    # for any (b_tile, q_tile) under the (8,128) rule.
    return pl.pallas_call(
        kernel,
        out_shape=jax.ShapeDtypeStruct((B, N, dim), dtype),
        grid_spec=pltpu.PrefetchScalarGridSpec(
            num_scalar_prefetch=0,
            grid=grid,
            in_specs=[
                # Full-sequence block (K/V source): re-DMA'd only when the
                # batch-block index changes (constant across query tiles).
                pl.BlockSpec((b_tile, N, dim), lambda i, j: (i, 0, 0)),
                # Query tile.
                pl.BlockSpec((b_tile, q_tile, dim), lambda i, j: (i, j, 0)),
                # Weights: constant index maps -> fetched once, never re-DMA'd.
                pl.BlockSpec((dim, hidden), lambda i, j: (0, 0)),
                pl.BlockSpec((dim, hidden), lambda i, j: (0, 0)),
                pl.BlockSpec((dim, hidden), lambda i, j: (0, 0)),
                pl.BlockSpec((hidden, dim), lambda i, j: (0, 0)),
            ],
            out_specs=pl.BlockSpec((b_tile, q_tile, dim), lambda i, j: (i, j, 0)),
            # Head-major K/V cache, computed at query-tile 0 and reused.
            scratch_shapes=[pltpu.VMEM((heads, b_tile, N, dim_head), dtype),
                            pltpu.VMEM((heads, b_tile, N, dim_head), dtype)],
        ),
        compiler_params=pltpu.CompilerParams(
            # Batch blocks -> megacore sharding; query tiles carry the K/V
            # scratch dependency -> sequential ("arbitrary").
            dimension_semantics=("parallel", "arbitrary"),
            vmem_limit_bytes=int(vmem_limit),
        ),
    )(x, x, wq, wk, wv, w_out)


# ---------------------------------------------------------------------------
# Pure-JAX reference (matches the PyTorch forward, default-None path)
# ---------------------------------------------------------------------------
def attention_ref(x, w_qkv, w_out, *, heads, dim_head):
    B, N, _ = x.shape
    hidden = heads * dim_head
    scale = dim_head ** -0.5
    hp = jax.lax.Precision.HIGHEST

    qkv = jnp.einsum('bnd,de->bne', x, w_qkv, precision=hp)
    q, k, v = jnp.split(qkv, 3, axis=-1)
    split_heads = lambda t: t.reshape(B, N, heads, dim_head).transpose(0, 2, 1, 3)
    q, k, v = map(split_heads, (q, k, v))
    q = q * scale
    sim = jnp.einsum('bhid,bhjd->bhij', q, k, precision=hp)
    sim = sim - jnp.max(sim, axis=-1, keepdims=True)
    attn = jax.nn.softmax(sim, axis=-1)
    out = jnp.einsum('bhij,bhjd->bhid', attn, v, precision=hp)
    out = out.transpose(0, 2, 1, 3).reshape(B, N, hidden)
    return jnp.einsum('bnh,hd->bnd', out, w_out, precision=hp)


if __name__ == "__main__":
    key = jax.random.PRNGKey(0)
    B, N, dim = 2, 8, 32          # batch=2, seq=8, model dim=32
    heads, dim_head = 4, 32       # module defaults -> hidden = 128
    hidden = heads * dim_head

    kx, kq, ko = jax.random.split(key, 3)
    x = jax.random.normal(kx, (B, N, dim), dtype=jnp.float32)
    # nn.Linear(dim, hidden*3, bias=False) / nn.Linear(hidden, dim, bias=False)
    w_qkv = jax.random.normal(kq, (dim, 3 * hidden), dtype=jnp.float32) / jnp.sqrt(dim)
    w_out = jax.random.normal(ko, (hidden, dim), dtype=jnp.float32) / jnp.sqrt(hidden)

    out = attention_pallas(x, w_qkv, w_out, heads=heads, dim_head=dim_head)
    out = jax.block_until_ready(out)

    ref = attention_ref(x, w_qkv, w_out, heads=heads, dim_head=dim_head)
    assert out.shape == (B, N, dim)
    assert jnp.allclose(out, ref, atol=2e-2, rtol=2e-2), \
        float(jnp.max(jnp.abs(out - ref)))
    print("KERNEL_OK")
</pallas_src>

<mosaic_0001>
module attributes {stable_mosaic.version = 11 : i64} {
  func.func @kernel(%arg0: i32, %arg1: i32, %arg2: memref<1x8x32xf32, #tpu.memory_space<vmem>>, %arg3: memref<1x8x32xf32, #tpu.memory_space<vmem>>, %arg4: memref<32x128xf32, #tpu.memory_space<vmem>>, %arg5: memref<32x128xf32, #tpu.memory_space<vmem>>, %arg6: memref<32x128xf32, #tpu.memory_space<vmem>>, %arg7: memref<128x32xf32, #tpu.memory_space<vmem>>, %arg8: memref<1x8x32xf32, #tpu.memory_space<vmem>>, %arg9: memref<4x1x8x32xf32, #tpu.memory_space<vmem>>, %arg10: memref<4x1x8x32xf32, #tpu.memory_space<vmem>>) attributes {dimension_semantics = [#tpu.dimension_semantics<parallel>, #tpu.dimension_semantics<arbitrary>], iteration_bounds = array<i64: 2, 1>, scalar_prefetch = 0 : i64, scratch_operands = 2 : i64, tpu.core_type = #tpu.core_type<tc>, window_params = [{transform_indices = @transform_0, window_bounds = array<i64: 1, 8, 32>}, {transform_indices = @transform_1, window_bounds = array<i64: 1, 8, 32>}, {pipeline_mode = #tpu.pipeline_mode<synchronous>, transform_indices = @transform_2, window_bounds = array<i64: 32, 128>}, {pipeline_mode = #tpu.pipeline_mode<synchronous>, transform_indices = @transform_3, window_bounds = array<i64: 32, 128>}, {pipeline_mode = #tpu.pipeline_mode<synchronous>, transform_indices = @transform_4, window_bounds = array<i64: 32, 128>}, {pipeline_mode = #tpu.pipeline_mode<synchronous>, transform_indices = @transform_5, window_bounds = array<i64: 128, 32>}, {transform_indices = @transform_6, window_bounds = array<i64: 1, 8, 32>}]} {
    %c0_i32 = arith.constant 0 : i32
    %0 = arith.cmpi eq, %arg1, %c0_i32 : i32
    %1 = arith.extui %0 : i1 to i32
    %c0_i32_0 = arith.constant 0 : i32
    %2 = arith.cmpi ne, %1, %c0_i32_0 : i32
    scf.if %2 {
      %c0_56 = arith.constant 0 : index
      %c0_57 = arith.constant 0 : index
      %c0_58 = arith.constant 0 : index
      %85 = vector.load %arg2[%c0_56, %c0_57, %c0_58] : memref<1x8x32xf32, #tpu.memory_space<vmem>>, vector<1x8x32xf32>
      %86 = vector.shape_cast %85 : vector<1x8x32xf32> to vector<8x32xf32>
      %c0_59 = arith.constant 0 : index
      %c0_60 = arith.constant 0 : index
      %87 = vector.load %arg5[%c0_59, %c0_60] : memref<32x128xf32, #tpu.memory_space<vmem>>, vector<32x128xf32>
      %cst_61 = arith.constant dense<0.000000e+00> : vector<8x128xf32>
      %88 = tpu.matmul %86, %87, %cst_61 {dimension_numbers = #tpu.dot_dimension_numbers<[1], [0], [0], [1], [0, 0, 1, 1], [], []>} : vector<8x32xf32>, vector<32x128xf32>, vector<8x128xf32> -> vector<8x128xf32>
      %c0_62 = arith.constant 0 : index
      %c0_63 = arith.constant 0 : index
      %89 = vector.load %arg6[%c0_62, %c0_63] : memref<32x128xf32, #tpu.memory_space<vmem>>, vector<32x128xf32>
      %cst_64 = arith.constant dense<0.000000e+00> : vector<8x128xf32>
      %90 = tpu.matmul %86, %89, %cst_64 {dimension_numbers = #tpu.dot_dimension_numbers<[1], [0], [0], [1], [0, 0, 1, 1], [], []>} : vector<8x32xf32>, vector<32x128xf32>, vector<8x128xf32> -> vector<8x128xf32>
      %91 = vector.extract_strided_slice %88 {offsets = [0, 0], sizes = [8, 32], strides = [1, 1]} : vector<8x128xf32> to vector<8x32xf32>
      %92 = vector.shape_cast %91 : vector<8x32xf32> to vector<1x8x32xf32>
      %c0_65 = arith.constant 0 : index
      %c0_66 = arith.constant 0 : index
      %c0_67 = arith.constant 0 : index
      %c0_68 = arith.constant 0 : index
      %93 = vector.load %arg9[%c0_65, %c0_66, %c0_67, %c0_68] : memref<4x1x8x32xf32, #tpu.memory_space<vmem>>, vector<1x1x8x32xf32>
      %94 = vector.shape_cast %93 : vector<1x1x8x32xf32> to vector<1x8x32xf32>
      %95 = vector.shape_cast %92 : vector<1x8x32xf32> to vector<1x1x8x32xf32>
      tpu.vector_store %arg9[%c0_65, %c0_66, %c0_67, %c0_68], %95 {strides = array<i32>} : memref<4x1x8x32xf32, #tpu.memory_space<vmem>>, vector<1x1x8x32xf32>,
      %96 = vector.extract_strided_slice %90 {offsets = [0, 0], sizes = [8, 32], strides = [1, 1]} : vector<8x128xf32> to vector<8x32xf32>
      %97 = vector.shape_cast %96 : vector<8x32xf32> to vector<1x8x32xf32>
      %c0_69 = arith.constant 0 : index
      %c0_70 = arith.constant 0 : index
      %c0_71 = arith.constant 0 : index
      %c0_72 = arith.constant 0 : index
      %98 = vector.load %arg10[%c0_69, %c0_70, %c0_71, %c0_72] : memref<4x1x8x32xf32, #tpu.memory_space<vmem>>, vector<1x1x8x32xf32>
      %99 = vector.shape_cast %98 : vector<1x1x8x32xf32> to vector<1x8x32xf32>
      %100 = vector.shape_cast %97 : vector<1x8x32xf32> to vector<1x1x8x32xf32>
      tpu.vector_store %arg10[%c0_69, %c0_70, %c0_71, %c0_72], %100 {strides = array<i32>} : memref<4x1x8x32xf32, #tpu.memory_space<vmem>>, vector<1x1x8x32xf32>,
      %101 = vector.extract_strided_slice %88 {offsets = [0, 32], sizes = [8, 32], strides = [1, 1]} : vector<8x128xf32> to vector<8x32xf32>
      %102 = vector.shape_cast %101 : vector<8x32xf32> to vector<1x8x32xf32>
      %c1_73 = arith.constant 1 : index
      %c0_74 = arith.constant 0 : index
      %c0_75 = arith.constant 0 : index
      %c0_76 = arith.constant 0 : index
      %103 = vector.load %arg9[%c1_73, %c0_74, %c0_75, %c0_76] : memref<4x1x8x32xf32, #tpu.memory_space<vmem>>, vector<1x1x8x32xf32>
      %104 = vector.shape_cast %103 : vector<1x1x8x32xf32> to vector<1x8x32xf32>
      %105 = vector.shape_cast %102 : vector<1x8x32xf32> to vector<1x1x8x32xf32>
      tpu.vector_store %arg9[%c1_73, %c0_74, %c0_75, %c0_76], %105 {strides = array<i32>} : memref<4x1x8x32xf32, #tpu.memory_space<vmem>>, vector<1x1x8x32xf32>,
      %106 = vector.extract_strided_slice %90 {offsets = [0, 32], sizes = [8, 32], strides = [1, 1]} : vector<8x128xf32> to vector<8x32xf32>
      %107 = vector.shape_cast %106 : vector<8x32xf32> to vector<1x8x32xf32>
      %c1_77 = arith.constant 1 : index
      %c0_78 = arith.constant 0 : index
      %c0_79 = arith.constant 0 : index
      %c0_80 = arith.constant 0 : index
      %108 = vector.load %arg10[%c1_77, %c0_78, %c0_79, %c0_80] : memref<4x1x8x32xf32, #tpu.memory_space<vmem>>, vector<1x1x8x32xf32>
      %109 = vector.shape_cast %108 : vector<1x1x8x32xf32> to vector<1x8x32xf32>
      %110 = vector.shape_cast %107 : vector<1x8x32xf32> to vector<1x1x8x32xf32>
      tpu.vector_store %arg10[%c1_77, %c0_78, %c0_79, %c0_80], %110 {strides = array<i32>} : memref<4x1x8x32xf32, #tpu.memory_space<vmem>>, vector<1x1x8x32xf32>,
      %111 = vector.extract_strided_slice %88 {offsets = [0, 64], sizes = [8, 32], strides = [1, 1]} : vector<8x128xf32> to vector<8x32xf32>
      %112 = vector.shape_cast %111 : vector<8x32xf32> to vector<1x8x32xf32>
      %c2_81 = arith.constant 2 : index
      %c0_82 = arith.constant 0 : index
      %c0_83 = arith.constant 0 : index
      %c0_84 = arith.constant 0 : index
      %113 = vector.load %arg9[%c2_81, %c0_82, %c0_83, %c0_84] : memref<4x1x8x32xf32, #tpu.memory_space<vmem>>, vector<1x1x8x32xf32>
      %114 = vector.shape_cast %113 : vector<1x1x8x32xf32> to vector<1x8x32xf32>
      %115 = vector.shape_cast %112 : vector<1x8x32xf32> to vector<1x1x8x32xf32>
      tpu.vector_store %arg9[%c2_81, %c0_82, %c0_83, %c0_84], %115 {strides = array<i32>} : memref<4x1x8x32xf32, #tpu.memory_space<vmem>>, vector<1x1x8x32xf32>,
      %116 = vector.extract_strided_slice %90 {offsets = [0, 64], sizes = [8, 32], strides = [1, 1]} : vector<8x128xf32> to vector<8x32xf32>
      %117 = vector.shape_cast %116 : vector<8x32xf32> to vector<1x8x32xf32>
      %c2_85 = arith.constant 2 : index
      %c0_86 = arith.constant 0 : index
      %c0_87 = arith.constant 0 : index
      %c0_88 = arith.constant 0 : index
      %118 = vector.load %arg10[%c2_85, %c0_86, %c0_87, %c0_88] : memref<4x1x8x32xf32, #tpu.memory_space<vmem>>, vector<1x1x8x32xf32>
      %119 = vector.shape_cast %118 : vector<1x1x8x32xf32> to vector<1x8x32xf32>
      %120 = vector.shape_cast %117 : vector<1x8x32xf32> to vector<1x1x8x32xf32>
      tpu.vector_store %arg10[%c2_85, %c0_86, %c0_87, %c0_88], %120 {strides = array<i32>} : memref<4x1x8x32xf32, #tpu.memory_space<vmem>>, vector<1x1x8x32xf32>,
      %121 = vector.extract_strided_slice %88 {offsets = [0, 96], sizes = [8, 32], strides = [1, 1]} : vector<8x128xf32> to vector<8x32xf32>
      %122 = vector.shape_cast %121 : vector<8x32xf32> to vector<1x8x32xf32>
      %c3_89 = arith.constant 3 : index
      %c0_90 = arith.constant 0 : index
      %c0_91 = arith.constant 0 : index
      %c0_92 = arith.constant 0 : index
      %123 = vector.load %arg9[%c3_89, %c0_90, %c0_91, %c0_92] : memref<4x1x8x32xf32, #tpu.memory_space<vmem>>, vector<1x1x8x32xf32>
      %124 = vector.shape_cast %123 : vector<1x1x8x32xf32> to vector<1x8x32xf32>
      %125 = vector.shape_cast %122 : vector<1x8x32xf32> to vector<1x1x8x32xf32>
      tpu.vector_store %arg9[%c3_89, %c0_90, %c0_91, %c0_92], %125 {strides = array<i32>} : memref<4x1x8x32xf32, #tpu.memory_space<vmem>>, vector<1x1x8x32xf32>,
      %126 = vector.extract_strided_slice %90 {offsets = [0, 96], sizes = [8, 32], strides = [1, 1]} : vector<8x128xf32> to vector<8x32xf32>
      %127 = vector.shape_cast %126 : vector<8x32xf32> to vector<1x8x32xf32>
      %c3_93 = arith.constant 3 : index
      %c0_94 = arith.constant 0 : index
      %c0_95 = arith.constant 0 : index
      %c0_96 = arith.constant 0 : index
      %128 = vector.load %arg10[%c3_93, %c0_94, %c0_95, %c0_96] : memref<4x1x8x32xf32, #tpu.memory_space<vmem>>, vector<1x1x8x32xf32>
      %129 = vector.shape_cast %128 : vector<1x1x8x32xf32> to vector<1x8x32xf32>
      %130 = vector.shape_cast %127 : vector<1x8x32xf32> to vector<1x1x8x32xf32>
      tpu.vector_store %arg10[%c3_93, %c0_94, %c0_95, %c0_96], %130 {strides = array<i32>} : memref<4x1x8x32xf32, #tpu.memory_space<vmem>>, vector<1x1x8x32xf32>,
    } else {
    }
    %c0 = arith.constant 0 : index
    %c0_1 = arith.constant 0 : index
    %c0_2 = arith.constant 0 : index
    %3 = vector.load %arg3[%c0, %c0_1, %c0_2] : memref<1x8x32xf32, #tpu.memory_space<vmem>>, vector<1x8x32xf32>
    %4 = vector.shape_cast %3 : vector<1x8x32xf32> to vector<8x32xf32>
    %c0_3 = arith.constant 0 : index
    %c0_4 = arith.constant 0 : index
    %5 = vector.load %arg4[%c0_3, %c0_4] : memref<32x128xf32, #tpu.memory_space<vmem>>, vector<32x128xf32>
    %cst = arith.constant dense<0.000000e+00> : vector<8x128xf32>
    %6 = tpu.matmul %4, %5, %cst {dimension_numbers = #tpu.dot_dimension_numbers<[1], [0], [0], [1], [0, 0, 1, 1], [], []>} : vector<8x32xf32>, vector<32x128xf32>, vector<8x128xf32> -> vector<8x128xf32>
    %7 = vector.extract_strided_slice %6 {offsets = [0, 0], sizes = [8, 32], strides = [1, 1]} : vector<8x128xf32> to vector<8x32xf32>
    %8 = vector.shape_cast %7 : vector<8x32xf32> to vector<1x8x32xf32>
    %c0_5 = arith.constant 0 : index
    %c0_6 = arith.constant 0 : index
    %c0_7 = arith.constant 0 : index
    %c0_8 = arith.constant 0 : index
    %9 = vector.load %arg9[%c0_5, %c0_6, %c0_7, %c0_8] : memref<4x1x8x32xf32, #tpu.memory_space<vmem>>, vector<1x1x8x32xf32>
    %10 = vector.shape_cast %9 : vector<1x1x8x32xf32> to vector<1x8x32xf32>
    %c0_9 = arith.constant 0 : index
    %c0_10 = arith.constant 0 : index
    %c0_11 = arith.constant 0 : index
    %c0_12 = arith.constant 0 : index
    %11 = vector.load %arg10[%c0_9, %c0_10, %c0_11, %c0_12] : memref<4x1x8x32xf32, #tpu.memory_space<vmem>>, vector<1x1x8x32xf32>
    %12 = vector.shape_cast %11 : vector<1x1x8x32xf32> to vector<1x8x32xf32>
    "tpu.trace_start"() <{level = 10 : i32, message = "bqd,bkd->bqk"}> : () -> ()
    %cst_13 = arith.constant dense<0.000000e+00> : vector<1x8x8xf32>
    %13 = tpu.matmul %8, %10, %cst_13 {dimension_numbers = #tpu.dot_dimension_numbers<[2], [2], [1], [1], [0, 0, 0, 1, 1, 1], [0], [0]>} : vector<1x8x32xf32>, vector<1x8x32xf32>, vector<1x8x8xf32> -> vector<1x8x8xf32>
    "tpu.trace_stop"() : () -> ()
    %cst_14 = arith.constant dense<0xFF800000> : vector<1x8xf32>
    %14 = vector.multi_reduction <maximumf>, %13, %cst_14 [2] : vector<1x8x8xf32> to vector<1x8xf32>
    %15 = vector.shape_cast %14 : vector<1x8xf32> to vector<1x8x1xf32>
    %16 = vector.broadcast %15 : vector<1x8x1xf32> to vector<1x8x8xf32>
    %17 = arith.subf %13, %16 : vector<1x8x8xf32>
    %18 = math.exp %17 : vector<1x8x8xf32>
    %cst_15 = arith.constant dense<0.000000e+00> : vector<1x8xf32>
    %19 = vector.multi_reduction <add>, %18, %cst_15 [2] : vector<1x8x8xf32> to vector<1x8xf32>
    %20 = vector.shape_cast %19 : vector<1x8xf32> to vector<1x8x1xf32>
    "tpu.trace_start"() <{level = 10 : i32, message = "bqk,bkd->bqd"}> : () -> ()
    %cst_16 = arith.constant dense<0.000000e+00> : vector<1x8x32xf32>
    %21 = tpu.matmul %18, %12, %cst_16 {dimension_numbers = #tpu.dot_dimension_numbers<[2], [1], [1], [2], [0, 0, 0, 1, 1, 2], [0], [0]>} : vector<1x8x8xf32>, vector<1x8x32xf32>, vector<1x8x32xf32> -> vector<1x8x32xf32>
    "tpu.trace_stop"() : () -> ()
    %22 = tpu.reciprocal %20 {approx = true} : vector<1x8x1xf32> -> vector<1x8x1xf32>
    %23 = vector.broadcast %22 : vector<1x8x1xf32> to vector<1x8x32xf32>
    %24 = arith.mulf %21, %23 : vector<1x8x32xf32>
    %25 = vector.extract_strided_slice %6 {offsets = [0, 32], sizes = [8, 32], strides = [1, 1]} : vector<8x128xf32> to vector<8x32xf32>
    %26 = vector.shape_cast %25 : vector<8x32xf32> to vector<1x8x32xf32>
    %c1 = arith.constant 1 : index
    %c0_17 = arith.constant 0 : index
    %c0_18 = arith.constant 0 : index
    %c0_19 = arith.constant 0 : index
    %27 = vector.load %arg9[%c1, %c0_17, %c0_18, %c0_19] : memref<4x1x8x32xf32, #tpu.memory_space<vmem>>, vector<1x1x8x32xf32>
    %28 = vector.shape_cast %27 : vector<1x1x8x32xf32> to vector<1x8x32xf32>
    %c1_20 = arith.constant 1 : index
    %c0_21 = arith.constant 0 : index
    %c0_22 = arith.constant 0 : index
    %c0_23 = arith.constant 0 : index
    %29 = vector.load %arg10[%c1_20, %c0_21, %c0_22, %c0_23] : memref<4x1x8x32xf32, #tpu.memory_space<vmem>>, vector<1x1x8x32xf32>
    %30 = vector.shape_cast %29 : vector<1x1x8x32xf32> to vector<1x8x32xf32>
    "tpu.trace_start"() <{level = 10 : i32, message = "bqd,bkd->bqk"}> : () -> ()
    %cst_24 = arith.constant dense<0.000000e+00> : vector<1x8x8xf32>
    %31 = tpu.matmul %26, %28, %cst_24 {dimension_numbers = #tpu.dot_dimension_numbers<[2], [2], [1], [1], [0, 0, 0, 1, 1, 1], [0], [0]>} : vector<1x8x32xf32>, vector<1x8x32xf32>, vector<1x8x8xf32> -> vector<1x8x8xf32>
    "tpu.trace_stop"() : () -> ()
    %cst_25 = arith.constant dense<0xFF800000> : vector<1x8xf32>
    %32 = vector.multi_reduction <maximumf>, %31, %cst_25 [2] : vector<1x8x8xf32> to vector<1x8xf32>
    %33 = vector.shape_cast %32 : vector<1x8xf32> to vector<1x8x1xf32>
    %34 = vector.broadcast %33 : vector<1x8x1xf32> to vector<1x8x8xf32>
    %35 = arith.subf %31, %34 : vector<1x8x8xf32>
    %36 = math.exp %35 : vector<1x8x8xf32>
    %cst_26 = arith.constant dense<0.000000e+00> : vector<1x8xf32>
    %37 = vector.multi_reduction <add>, %36, %cst_26 [2] : vector<1x8x8xf32> to vector<1x8xf32>
    %38 = vector.shape_cast %37 : vector<1x8xf32> to vector<1x8x1xf32>
    "tpu.trace_start"() <{level = 10 : i32, message = "bqk,bkd->bqd"}> : () -> ()
    %cst_27 = arith.constant dense<0.000000e+00> : vector<1x8x32xf32>
    %39 = tpu.matmul %36, %30, %cst_27 {dimension_numbers = #tpu.dot_dimension_numbers<[2], [1], [1], [2], [0, 0, 0, 1, 1, 2], [0], [0]>} : vector<1x8x8xf32>, vector<1x8x32xf32>, vector<1x8x32xf32> -> vector<1x8x32xf32>
    "tpu.trace_stop"() : () -> ()
    %40 = tpu.reciprocal %38 {approx = true} : vector<1x8x1xf32> -> vector<1x8x1xf32>
    %41 = vector.broadcast %40 : vector<1x8x1xf32> to vector<1x8x32xf32>
    %42 = arith.mulf %39, %41 : vector<1x8x32xf32>
    %43 = vector.extract_strided_slice %6 {offsets = [0, 64], sizes = [8, 32], strides = [1, 1]} : vector<8x128xf32> to vector<8x32xf32>
    %44 = vector.shape_cast %43 : vector<8x32xf32> to vector<1x8x32xf32>
    %c2 = arith.constant 2 : index
    %c0_28 = arith.constant 0 : index
    %c0_29 = arith.constant 0 : index
    %c0_30 = arith.constant 0 : index
    %45 = vector.load %arg9[%c2, %c0_28, %c0_29, %c0_30] : memref<4x1x8x32xf32, #tpu.memory_space<vmem>>, vector<1x1x8x32xf32>
    %46 = vector.shape_cast %45 : vector<1x1x8x32xf32> to vector<1x8x32xf32>
    %c2_31 = arith.constant 2 : index
    %c0_32 = arith.constant 0 : index
    %c0_33 = arith.constant 0 : index
    %c0_34 = arith.constant 0 : index
    %47 = vector.load %arg10[%c2_31, %c0_32, %c0_33, %c0_34] : memref<4x1x8x32xf32, #tpu.memory_space<vmem>>, vector<1x1x8x32xf32>
    %48 = vector.shape_cast %47 : vector<1x1x8x32xf32> to vector<1x8x32xf32>
    "tpu.trace_start"() <{level = 10 : i32, message = "bqd,bkd->bqk"}> : () -> ()
    %cst_35 = arith.constant dense<0.000000e+00> : vector<1x8x8xf32>
    %49 = tpu.matmul %44, %46, %cst_35 {dimension_numbers = #tpu.dot_dimension_numbers<[2], [2], [1], [1], [0, 0, 0, 1, 1, 1], [0], [0]>} : vector<1x8x32xf32>, vector<1x8x32xf32>, vector<1x8x8xf32> -> vector<1x8x8xf32>
    "tpu.trace_stop"() : () -> ()
    %cst_36 = arith.constant dense<0xFF800000> : vector<1x8xf32>
    %50 = vector.multi_reduction <maximumf>, %49, %cst_36 [2] : vector<1x8x8xf32> to vector<1x8xf32>
    %51 = vector.shape_cast %50 : vector<1x8xf32> to vector<1x8x1xf32>
    %52 = vector.broadcast %51 : vector<1x8x1xf32> to vector<1x8x8xf32>
    %53 = arith.subf %49, %52 : vector<1x8x8xf32>
    %54 = math.exp %53 : vector<1x8x8xf32>
    %cst_37 = arith.constant dense<0.000000e+00> : vector<1x8xf32>
    %55 = vector.multi_reduction <add>, %54, %cst_37 [2] : vector<1x8x8xf32> to vector<1x8xf32>
    %56 = vector.shape_cast %55 : vector<1x8xf32> to vector<1x8x1xf32>
    "tpu.trace_start"() <{level = 10 : i32, message = "bqk,bkd->bqd"}> : () -> ()
    %cst_38 = arith.constant dense<0.000000e+00> : vector<1x8x32xf32>
    %57 = tpu.matmul %54, %48, %cst_38 {dimension_numbers = #tpu.dot_dimension_numbers<[2], [1], [1], [2], [0, 0, 0, 1, 1, 2], [0], [0]>} : vector<1x8x8xf32>, vector<1x8x32xf32>, vector<1x8x32xf32> -> vector<1x8x32xf32>
    "tpu.trace_stop"() : () -> ()
    %58 = tpu.reciprocal %56 {approx = true} : vector<1x8x1xf32> -> vector<1x8x1xf32>
    %59 = vector.broadcast %58 : vector<1x8x1xf32> to vector<1x8x32xf32>
    %60 = arith.mulf %57, %59 : vector<1x8x32xf32>
    %61 = vector.extract_strided_slice %6 {offsets = [0, 96], sizes = [8, 32], strides = [1, 1]} : vector<8x128xf32> to vector<8x32xf32>
    %62 = vector.shape_cast %61 : vector<8x32xf32> to vector<1x8x32xf32>
    %c3 = arith.constant 3 : index
    %c0_39 = arith.constant 0 : index
    %c0_40 = arith.constant 0 : index
    %c0_41 = arith.constant 0 : index
    %63 = vector.load %arg9[%c3, %c0_39, %c0_40, %c0_41] : memref<4x1x8x32xf32, #tpu.memory_space<vmem>>, vector<1x1x8x32xf32>
    %64 = vector.shape_cast %63 : vector<1x1x8x32xf32> to vector<1x8x32xf32>
    %c3_42 = arith.constant 3 : index
    %c0_43 = arith.constant 0 : index
    %c0_44 = arith.constant 0 : index
    %c0_45 = arith.constant 0 : index
    %65 = vector.load %arg10[%c3_42, %c0_43, %c0_44, %c0_45] : memref<4x1x8x32xf32, #tpu.memory_space<vmem>>, vector<1x1x8x32xf32>
    %66 = vector.shape_cast %65 : vector<1x1x8x32xf32> to vector<1x8x32xf32>
    "tpu.trace_start"() <{level = 10 : i32, message = "bqd,bkd->bqk"}> : () -> ()
    %cst_46 = arith.constant dense<0.000000e+00> : vector<1x8x8xf32>
    %67 = tpu.matmul %62, %64, %cst_46 {dimension_numbers = #tpu.dot_dimension_numbers<[2], [2], [1], [1], [0, 0, 0, 1, 1, 1], [0], [0]>} : vector<1x8x32xf32>, vector<1x8x32xf32>, vector<1x8x8xf32> -> vector<1x8x8xf32>
    "tpu.trace_stop"() : () -> ()
    %cst_47 = arith.constant dense<0xFF800000> : vector<1x8xf32>
    %68 = vector.multi_reduction <maximumf>, %67, %cst_47 [2] : vector<1x8x8xf32> to vector<1x8xf32>
    %69 = vector.shape_cast %68 : vector<1x8xf32> to vector<1x8x1xf32>
    %70 = vector.broadcast %69 : vector<1x8x1xf32> to vector<1x8x8xf32>
    %71 = arith.subf %67, %70 : vector<1x8x8xf32>
    %72 = math.exp %71 : vector<1x8x8xf32>
    %cst_48 = arith.constant dense<0.000000e+00> : vector<1x8xf32>
    %73 = vector.multi_reduction <add>, %72, %cst_48 [2] : vector<1x8x8xf32> to vector<1x8xf32>
    %74 = vector.shape_cast %73 : vector<1x8xf32> to vector<1x8x1xf32>
    "tpu.trace_start"() <{level = 10 : i32, message = "bqk,bkd->bqd"}> : () -> ()
    %cst_49 = arith.constant dense<0.000000e+00> : vector<1x8x32xf32>
    %75 = tpu.matmul %72, %66, %cst_49 {dimension_numbers = #tpu.dot_dimension_numbers<[2], [1], [1], [2], [0, 0, 0, 1, 1, 2], [0], [0]>} : vector<1x8x8xf32>, vector<1x8x32xf32>, vector<1x8x32xf32> -> vector<1x8x32xf32>
    "tpu.trace_stop"() : () -> ()
    %76 = tpu.reciprocal %74 {approx = true} : vector<1x8x1xf32> -> vector<1x8x1xf32>
    %77 = vector.broadcast %76 : vector<1x8x1xf32> to vector<1x8x32xf32>
    %78 = arith.mulf %75, %77 : vector<1x8x32xf32>
    %79 = tpu.concatenate %24, %42, %60, %78 in 2 : vector<1x8x32xf32>, vector<1x8x32xf32>, vector<1x8x32xf32>, vector<1x8x32xf32> -> vector<1x8x128xf32>
    %80 = vector.shape_cast %79 : vector<1x8x128xf32> to vector<8x128xf32>
    %c0_50 = arith.constant 0 : index
    %c0_51 = arith.constant 0 : index
    %81 = vector.load %arg7[%c0_50, %c0_51] : memref<128x32xf32, #tpu.memory_space<vmem>>, vector<128x32xf32>
    %cst_52 = arith.constant dense<0.000000e+00> : vector<8x32xf32>
    %82 = tpu.matmul %80, %81, %cst_52 {dimension_numbers = #tpu.dot_dimension_numbers<[1], [0], [0], [1], [0, 0, 1, 1], [], []>} : vector<8x128xf32>, vector<128x32xf32>, vector<8x32xf32> -> vector<8x32xf32>
    %83 = vector.shape_cast %82 : vector<8x32xf32> to vector<1x8x32xf32>
    %c0_53 = arith.constant 0 : index
    %c0_54 = arith.constant 0 : index
    %c0_55 = arith.constant 0 : index
    %84 = vector.load %arg8[%c0_53, %c0_54, %c0_55] : memref<1x8x32xf32, #tpu.memory_space<vmem>>, vector<1x8x32xf32>
    tpu.vector_store %arg8[%c0_53, %c0_54, %c0_55], %83 {strides = array<i32>} : memref<1x8x32xf32, #tpu.memory_space<vmem>>, vector<1x8x32xf32>,
    return
  }
  func.func @transform_0(%arg0: i32, %arg1: i32) -> (i32, i32, i32) {
    %c0_i32 = arith.constant 0 : i32
    %c0_i32_0 = arith.constant 0 : i32
    %c0_i32_1 = arith.constant 0 : i32
    return %arg0, %c0_i32, %c0_i32_0 : i32, i32, i32
  }
  func.func @transform_1(%arg0: i32, %arg1: i32) -> (i32, i32, i32) {
    %c0_i32 = arith.constant 0 : i32
    %c0_i32_0 = arith.constant 0 : i32
    return %arg0, %arg1, %c0_i32 : i32, i32, i32
  }
  func.func @transform_2(%arg0: i32, %arg1: i32) -> (i32, i32) {
    %c0_i32 = arith.constant 0 : i32
    %c0_i32_0 = arith.constant 0 : i32
    %c0_i32_1 = arith.constant 0 : i32
    return %c0_i32, %c0_i32_0 : i32, i32
  }
  func.func @transform_3(%arg0: i32, %arg1: i32) -> (i32, i32) {
    %c0_i32 = arith.constant 0 : i32
    %c0_i32_0 = arith.constant 0 : i32
    %c0_i32_1 = arith.constant 0 : i32
    return %c0_i32, %c0_i32_0 : i32, i32
  }
  func.func @transform_4(%arg0: i32, %arg1: i32) -> (i32, i32) {
    %c0_i32 = arith.constant 0 : i32
    %c0_i32_0 = arith.constant 0 : i32
    %c0_i32_1 = arith.constant 0 : i32
    return %c0_i32, %c0_i32_0 : i32, i32
  }
  func.func @transform_5(%arg0: i32, %arg1: i32) -> (i32, i32) {
    %c0_i32 = arith.constant 0 : i32
    %c0_i32_0 = arith.constant 0 : i32
    %c0_i32_1 = arith.constant 0 : i32
    return %c0_i32, %c0_i32_0 : i32, i32
  }
  func.func @transform_6(%arg0: i32, %arg1: i32) -> (i32, i32, i32) {
    %c0_i32 = arith.constant 0 : i32
    %c0_i32_0 = arith.constant 0 : i32
    return %arg0, %arg1, %c0_i32 : i32, i32, i32
  }
}

</mosaic_0001>

<llo_original>
// kernel: tpu_custom_call.1
$region0: #{tpu_custom_call.1}
  #allocation0 [shape = 'u32[]', space=smem, size = 0x4, offset = 0x4, fixed_abs, tag = 'smem constant byte address 0x4 - core index']
  #allocation1 [shape = 'u32[72,128]{1,0:T(1,128)}', space=vmem, size = 0x9000, scoped, tag = 'internal scratch']
  #allocation2 [shape = 'f32[4,1,8,32]{3,2,1,0:T(8,128)}', space=vmem, size = 0x4000, scoped, tag = 'scratch operand']
  #allocation3 [shape = 'f32[4,1,8,32]{3,2,1,0:T(8,128)}', space=vmem, size = 0x4000, scoped, tag = 'scratch operand']
  %s0 = inlined_call_operand.vmem [shape: f32[2,8,32], index: 0, kind: input, shape index: {}]
  %s1 = inlined_call_operand.vmem [shape: f32[2,8,32], index: 1, kind: input, shape index: {}]
  %s2 = inlined_call_operand.vmem [shape: f32[32,128], index: 2, kind: input, shape index: {}]
  %s3 = inlined_call_operand.vmem [shape: f32[32,128], index: 3, kind: input, shape index: {}]
  %s4 = inlined_call_operand.vmem [shape: f32[32,128], index: 4, kind: input, shape index: {}]
  %s5 = inlined_call_operand.vmem [shape: f32[128,32], index: 5, kind: input, shape index: {}]
  %s6 = inlined_call_operand.hbm [shape: f32[2,8,32], index: 6, kind: output, shape index: {}]
  %s7 = sld [smem:[#allocation0]]
  $region61: #{tpu_custom_call.1} parent=0
    _
  %s9 = ssub.s32 1, %s7
  %s10 = scalar_select 0, %s9, %s7
  $region1: #{tpu_custom_call.1} parent=0
    #allocation4 [shape = 'u8[8192]{0}', space=vmem, size = 0x2000, scoped, tag = 'output window, operand 0']
    #allocation5 [shape = 's32[2]{0}', space=sflag, size = 0x8, scoped, tag = 'scoped memory for tpu_custom_call.1']
    %11 = vsyncpa [#allocation5], 0
    %s12 = scalar_lea.sflag [#allocation5], 1
    %13 = vsyncpa %s12, 0
    loop: start=0, step=1, limit=4
    $region2: #{tpu_custom_call.1} parent=1 // loop_pre_header
      _
    $region3: #{tpu_custom_call.1} parent=1 // loop_header
      %s15 = sphi 0, %s19
      %p16 = scmp.ge.s32.totalorder %s15, 4
      %s22 = sphi 0, %s34
      %s23 = sphi 0, %s30
      %s24 = sphi 0, %s22
      %s25 = sphi 0, %s23
      %s26 = sphi 0, %s24
      %s27 = sphi 0, %s25
      %s37 = sphi 0, %s39
      %s40 = sphi 0, %s37
      %s41 = sphi 0, %s40
      %s57 = sphi 0, %s41
      %s65 = sphi 0, %s67
      %s68 = sphi 0, %s65
      %s69 = sphi 0, %s68
      %s85 = sphi 0, %s69
      %s89 = sphi 0, %s89
      %s91 = sphi 0, %s89
      %s92 = sphi 0, %s91
      %s106 = sphi 0, %s92
      %s110 = sphi 0, %s110
      %s112 = sphi 0, %s110
      %s113 = sphi 0, %s112
      %s127 = sphi 0, %s113
      %s131 = sphi 0, %s131
      %s133 = sphi 0, %s131
      %s134 = sphi 0, %s133
      %s148 = sphi 0, %s134
      %s152 = sphi 0, %s152
      %s154 = sphi 0, %s152
      %s155 = sphi 0, %s154
      %s169 = sphi 0, %s155
      %s177 = sphi 0, %s179
      %s180 = sphi 0, %s177
      %s181 = sphi 0, %s180
      %s197 = sphi 0, %s181
    $region4: #{tpu_custom_call.1} parent=1 // loop_header_branch
      %18 = sbr.rel (%p16) target = $region8
    $region5: #{tpu_custom_call.1} parent=1 // loop_body
      %s20 = ssub.s32 %s15, 1
      %s21 = ssub.s32 %s15, 2
      %s28 = sadd.s32 1, %s23
      %p29 = scmp.ge.s32.totalorder %s28, 1
      %s30 = scalar_select %p29, 0, %s28
      %s31 = sadd.s32 1, %s22
      %s32 = scalar_select %p29, %s31, %s22
      %p33 = scmp.ge.s32.totalorder %s32, 2
      %s34 = scalar_select %p33, 0, %s32
      %s35 = ssub.s32 %s22, %s34
      %p36 = scmp.eq.s32.totalorder %s35, 0
      %s38 = sadd.s32 %s37, 1
      %s39 = scalar_select %p36, %s37, %s38
      %p42 = pneg %p36
      %p43 = scmp.eq.s32.totalorder %s15, 1
      %p44 = por %p42, %p43
      %p45 = scmp.ne.s32.totalorder %s37, %s40
      %p46 = scmp.eq.s32.totalorder %s15, 0
      %p47 = por %p45, %p46
      %p48 = scmp.ne.s32.totalorder %s37, %s40
      %p49 = scmp.eq.s32.totalorder %s20, 1
      %p50 = por %p48, %p49
      %p51 = scmp.ne.s32.totalorder %s40, %s41
      %p52 = scmp.eq.s32.totalorder %s20, 0
      %p53 = por %p51, %p52
      %p54 = scmp.ne.s32.totalorder %s40, %s41
      %p55 = scmp.eq.s32.totalorder %s21, 1
      %p56 = por %p54, %p55
      %p58 = scmp.ne.s32.totalorder %s41, %s57
      %p59 = scmp.eq.s32.totalorder %s21, 0
      %p60 = por %p58, %p59
      %s61 = ssub.s32 %s22, %s34
      %s62 = ssub.s32 %s23, %s30
      %s63 = sor.u32 %s61, %s62
      %p64 = scmp.eq.s32.totalorder %s63, 0
      %s66 = sadd.s32 %s65, 1
      %s67 = scalar_select %p64, %s65, %s66
      %p70 = pneg %p64
      %p71 = scmp.eq.s32.totalorder %s15, 1
      %p72 = por %p70, %p71
      %p73 = scmp.ne.s32.totalorder %s65, %s68
      %p74 = scmp.eq.s32.totalorder %s15, 0
      %p75 = por %p73, %p74
      %p76 = scmp.ne.s32.totalorder %s65, %s68
      %p77 = scmp.eq.s32.totalorder %s20, 1
      %p78 = por %p76, %p77
      %p79 = scmp.ne.s32.totalorder %s68, %s69
      %p80 = scmp.eq.s32.totalorder %s20, 0
      %p81 = por %p79, %p80
      %p82 = scmp.ne.s32.totalorder %s68, %s69
      %p83 = scmp.eq.s32.totalorder %s21, 1
      %p84 = por %p82, %p83
      %p86 = scmp.ne.s32.totalorder %s69, %s85
      %p87 = scmp.eq.s32.totalorder %s21, 0
      %p88 = por %p86, %p87
      %s90 = sadd.s32 %s89, 1
      %p93 = scmp.eq.s32.totalorder %s15, 1
      %p94 = scmp.ne.s32.totalorder %s89, %s91
      %p95 = scmp.eq.s32.totalorder %s15, 0
      %p96 = por %p94, %p95
      %p97 = scmp.ne.s32.totalorder %s89, %s91
      %p98 = scmp.eq.s32.totalorder %s20, 1
      %p99 = por %p97, %p98
      %p100 = scmp.ne.s32.totalorder %s91, %s92
      %p101 = scmp.eq.s32.totalorder %s20, 0
      %p102 = por %p100, %p101
      %p103 = scmp.ne.s32.totalorder %s91, %s92
      %p104 = scmp.eq.s32.totalorder %s21, 1
      %p105 = por %p103, %p104
      %p107 = scmp.ne.s32.totalorder %s92, %s106
      %p108 = scmp.eq.s32.totalorder %s21, 0
      %p109 = por %p107, %p108
      %s111 = sadd.s32 %s110, 1
      %p114 = scmp.eq.s32.totalorder %s15, 1
      %p115 = scmp.ne.s32.totalorder %s110, %s112
      %p116 = scmp.eq.s32.totalorder %s15, 0
      %p117 = por %p115, %p116
      %p118 = scmp.ne.s32.totalorder %s110, %s112
      %p119 = scmp.eq.s32.totalorder %s20, 1
      %p120 = por %p118, %p119
      %p121 = scmp.ne.s32.totalorder %s112, %s113
      %p122 = scmp.eq.s32.totalorder %s20, 0
      %p123 = por %p121, %p122
      %p124 = scmp.ne.s32.totalorder %s112, %s113
      %p125 = scmp.eq.s32.totalorder %s21, 1
      %p126 = por %p124, %p125
      %p128 = scmp.ne.s32.totalorder %s113, %s127
      %p129 = scmp.eq.s32.totalorder %s21, 0
      %p130 = por %p128, %p129
      %s132 = sadd.s32 %s131, 1
      %p135 = scmp.eq.s32.totalorder %s15, 1
      %p136 = scmp.ne.s32.totalorder %s131, %s133
      %p137 = scmp.eq.s32.totalorder %s15, 0
      %p138 = por %p136, %p137
      %p139 = scmp.ne.s32.totalorder %s131, %s133
      %p140 = scmp.eq.s32.totalorder %s20, 1
      %p141 = por %p139, %p140
      %p142 = scmp.ne.s32.totalorder %s133, %s134
      %p143 = scmp.eq.s32.totalorder %s20, 0
      %p144 = por %p142, %p143
      %p145 = scmp.ne.s32.totalorder %s133, %s134
      %p146 = scmp.eq.s32.totalorder %s21, 1
      %p147 = por %p145, %p146
      %p149 = scmp.ne.s32.totalorder %s134, %s148
      %p150 = scmp.eq.s32.totalorder %s21, 0
      %p151 = por %p149, %p150
      %s153 = sadd.s32 %s152, 1
      %p156 = scmp.eq.s32.totalorder %s15, 1
      %p157 = scmp.ne.s32.totalorder %s152, %s154
      %p158 = scmp.eq.s32.totalorder %s15, 0
      %p159 = por %p157, %p158
      %p160 = scmp.ne.s32.totalorder %s152, %s154
      %p161 = scmp.eq.s32.totalorder %s20, 1
      %p162 = por %p160, %p161
      %p163 = scmp.ne.s32.totalorder %s154, %s155
      %p164 = scmp.eq.s32.totalorder %s20, 0
      %p165 = por %p163, %p164
      %p166 = scmp.ne.s32.totalorder %s154, %s155
      %p167 = scmp.eq.s32.totalorder %s21, 1
      %p168 = por %p166, %p167
      %p170 = scmp.ne.s32.totalorder %s155, %s169
      %p171 = scmp.eq.s32.totalorder %s21, 0
      %p172 = por %p170, %p171
      %s173 = ssub.s32 %s22, %s34
      %s174 = ssub.s32 %s23, %s30
      %s175 = sor.u32 %s173, %s174
      %p176 = scmp.eq.s32.totalorder %s175, 0
      %s178 = sadd.s32 %s177, 1
      %s179 = scalar_select %p176, %s177, %s178
      %p182 = pneg %p176
      %p183 = scmp.eq.s32.totalorder %s15, 1
      %p184 = por %p182, %p183
      %p185 = scmp.ne.s32.totalorder %s177, %s180
      %p186 = scmp.eq.s32.totalorder %s15, 0
      %p187 = por %p185, %p186
      %p188 = scmp.ne.s32.totalorder %s177, %s180
      %p189 = scmp.eq.s32.totalorder %s20, 1
      %p190 = por %p188, %p189
      %p191 = scmp.ne.s32.totalorder %s180, %s181
      %p192 = scmp.eq.s32.totalorder %s20, 0
      %p193 = por %p191, %p192
      %p194 = scmp.ne.s32.totalorder %s180, %s181
      %p195 = scmp.eq.s32.totalorder %s21, 1
      %p196 = por %p194, %p195
      %p198 = scmp.ne.s32.totalorder %s181, %s197
      %p199 = scmp.eq.s32.totalorder %s21, 0
      %p200 = por %p198, %p199
      %p201 = scmp.le.s32.totalorder 1, %s15
      %p202 = scmp.lt.s32.totalorder %s15, 3
      %p203 = pnand %p201, %p202
      %p204 = pneg %p203
      // Predicated region
      $region9: #{tpu_custom_call.1} parent=5 // pred_check
        _
      $region10: #{tpu_custom_call.1} parent=5 // pred_check_branch
        %206 = sbr.rel (%p203) target = $region12
      $region11: #{tpu_custom_call.1} parent=5 // pred_region
        %s207 = ssub.s32 %s15, 1
        // Predicated region
        $region13: #{tpu_custom_call.1} parent=11 // pred_check
          %p208 = pneg %p102
        $region14: #{tpu_custom_call.1} parent=11 // pred_check_branch
          %210 = sbr.rel (%p208) target = $region16
        $region15: #{tpu_custom_call.1} parent=11 // pred_region
          _
        $region16: #{tpu_custom_call.1} parent=11 // pred_fallthru
          _
        // Predicated region
        $region17: #{tpu_custom_call.1} parent=11 // pred_check
          %p211 = pneg %p123
        $region18: #{tpu_custom_call.1} parent=11 // pred_check_branch
          %213 = sbr.rel (%p211) target = $region20
        $region19: #{tpu_custom_call.1} parent=11 // pred_region
          _
        $region20: #{tpu_custom_call.1} parent=11 // pred_fallthru
          _
        // Predicated region
        $region21: #{tpu_custom_call.1} parent=11 // pred_check
          %p214 = pneg %p144
        $region22: #{tpu_custom_call.1} parent=11 // pred_check_branch
          %216 = sbr.rel (%p214) target = $region24
        $region23: #{tpu_custom_call.1} parent=11 // pred_region
          _
        $region24: #{tpu_custom_call.1} parent=11 // pred_fallthru
          _
        // Predicated region
        $region25: #{tpu_custom_call.1} parent=11 // pred_check
          %p217 = pneg %p165
        $region26: #{tpu_custom_call.1} parent=11 // pred_check_branch
          %219 = sbr.rel (%p217) target = $region28
        $region27: #{tpu_custom_call.1} parent=11 // pred_region
          _
        $region28: #{tpu_custom_call.1} parent=11 // pred_fallthru
          _
      $region12: #{tpu_custom_call.1} parent=5 // pred_fallthru
        _
      %p220 = scmp.lt.s32.totalorder %s15, 2
      // Predicated region
      $region29: #{tpu_custom_call.1} parent=5 // pred_check
        %p221 = pneg %p220
      $region30: #{tpu_custom_call.1} parent=5 // pred_check_branch
        %223 = sbr.rel (%p221) target = $region32
      $region31: #{tpu_custom_call.1} parent=5 // pred_region
        // Predicated region
        $region33: #{tpu_custom_call.1} parent=31 // pred_check
          %p224 = pneg %p47
        $region34: #{tpu_custom_call.1} parent=31 // pred_check_branch
          %226 = sbr.rel (%p224) target = $region36
        $region35: #{tpu_custom_call.1} parent=31 // pred_region
          %p227 = scmp.lt.s32.totalorder %s22, 1
          %s228 = scalar_select %p227, %s22, 1
          %s229 = smul.addr %s228, 8
          %s230 = scalar_lea.vmem %s0, %s229
        $region36: #{tpu_custom_call.1} parent=31 // pred_fallthru
          _
        // Predicated region
        $region37: #{tpu_custom_call.1} parent=31 // pred_check
          %p231 = pneg %p75
        $region38: #{tpu_custom_call.1} parent=31 // pred_check_branch
          %233 = sbr.rel (%p231) target = $region40
        $region39: #{tpu_custom_call.1} parent=31 // pred_region
          %p234 = scmp.lt.s32.totalorder %s22, 1
          %s235 = scalar_select %p234, %s22, 1
          %p236 = scmp.lt.s32.totalorder %s23, 0
          %s237 = scalar_select %p236, %s23, 0
          %s238 = sadd.s32 %s237, %s235
          %s239 = smul.addr %s238, 8
          %s240 = scalar_lea.vmem %s1, %s239
        $region40: #{tpu_custom_call.1} parent=31 // pred_fallthru
          _
      $region32: #{tpu_custom_call.1} parent=5 // pred_fallthru
        _
      %p241 = scmp.le.s32.totalorder 1, %s15
      %p242 = scmp.lt.s32.totalorder %s15, 3
      %p243 = pnand %p241, %p242
      %p244 = pneg %p243
      // Predicated region
      $region41: #{tpu_custom_call.1} parent=5 // pred_check
        _
      $region42: #{tpu_custom_call.1} parent=5 // pred_check_branch
        %246 = sbr.rel (%p243) target = $region44
      $region43: #{tpu_custom_call.1} parent=5 // pred_region
        %s247 = ssub.s32 %s15, 1
        %p248 = scmp.lt.s32.totalorder %s24, 1
        %s249 = scalar_select %p248, %s24, 1
        %s250 = smul.addr %s249, 8
        %s251 = scalar_lea.vmem %s0, %s250
        %p252 = pneg %p53
        %p253 = pneg %p50
        %p254 = scmp.lt.s32.totalorder %s24, 1
        %s255 = scalar_select %p254, %s24, 1
        %p256 = scmp.lt.s32.totalorder %s25, 0
        %s257 = scalar_select %p256, %s25, 0
        %s258 = sadd.s32 %s257, %s255
        %s259 = smul.addr %s258, 8
        %s260 = scalar_lea.vmem %s1, %s259
        %p261 = pneg %p81
        %p262 = pneg %p78
        %p263 = pneg %p102
        %p264 = pneg %p99
        %p265 = pneg %p123
        %p266 = pneg %p120
        %p267 = pneg %p144
        %p268 = pneg %p141
        %p269 = pneg %p165
        %p270 = pneg %p162
        %p271 = pneg %p193
        %p272 = pneg %p190
        %s273 = sand.u32 %s180, 1
        %s274 = scalar_lea.sflag [#allocation5], %s273
        %s275 = sand.u32 %s180, 1
        %s276 = smul.addr %s275, 8
        %s277 = scalar_lea.vmem [#allocation4], %s276
        %p278 = scmp.lt.s32.totalorder %s24, 1
        %s279 = scalar_select %p278, %s24, 1
        %s280 = smul.addr %s279, 8
        %s281 = scalar_lea.vmem %s0, %s280
        %p282 = scmp.lt.s32.totalorder %s24, 1
        %s283 = scalar_select %p282, %s24, 1
        %p284 = scmp.lt.s32.totalorder %s25, 0
        %s285 = scalar_select %p284, %s25, 0
        %s286 = sadd.s32 %s285, %s283
        %s287 = smul.addr %s286, 8
        %s288 = scalar_lea.vmem %s1, %s287
        %p289 = scmp.eq.s32.totalorder %s25, 0
        // Predicated region
        $region45: #{tpu_custom_call.1} parent=43 // pred_check
          %p290 = pneg %p289
        $region46: #{tpu_custom_call.1} parent=43 // pred_check_branch
          %292 = sbr.rel (%p290) target = $region48
        $region47: #{tpu_custom_call.1} parent=43 // pred_region
          %v293 = vld [vmem:[%s281] sm:$0xff]
          %v294 = vld [vmem:[%s3] sm:$0xff]
          %v295 = vld [vmem:[%s3 + $0x8] sm:$0xff]
          %v296 = vld [vmem:[%s3 + $0x10] sm:$0xff]
          %v297 = vld [vmem:[%s3 + $0x18] sm:$0xff]
          %vm298 = vcmask 261120
          %v300 = vsel %vm298, %v293, 0
          %302 = vmatpush.msra.mxu0 0.0
          %303 = vmatpush.msra.mxu0 0.0
          %304 = vmatpush.msra.mxu0 0.0
          %305 = vmatpush.msra.mxu0 0.0
          %306 = vmatpush.msra.mxu0 0.0
          %307 = vmatpush.msra.mxu0 0.0
          %308 = vmatpush.msra.mxu0 0.0
          %309 = vmatpush.msra.mxu0 0.0
          %310 = vmatpush.msra.mxu0 0.0
          %311 = vmatpush.msra.mxu0 0.0
          %312 = vmatpush.msra.mxu0 0.0
          %313 = vmatpush.msra.mxu0 0.0
          %314 = vmatpush.msra.mxu0 %v297
          %315 = vmatpush.msra.mxu0 %v296
          %316 = vmatpush.msra.mxu0 %v295
          %317 = vmatpush.msra.mxu0 %v294
          %318 = vmatmul.f32.gmra.mxu0 %v300
          %v319 = vpop.f32.mrf.mxu0
          %v320 = vadd.f32 0.0, %v319
          %321 = vdwg.mxu0
          %v322 = vld [vmem:[%s4] sm:$0xff]
          %v323 = vld [vmem:[%s4 + $0x8] sm:$0xff]
          %v324 = vld [vmem:[%s4 + $0x10] sm:$0xff]
          %v325 = vld [vmem:[%s4 + $0x18] sm:$0xff]
          %326 = vmatpush.msra.mxu0 0.0
          %327 = vmatpush.msra.mxu0 0.0
          %328 = vmatpush.msra.mxu0 0.0
          %329 = vmatpush.msra.mxu0 0.0
          %330 = vmatpush.msra.mxu0 0.0
          %331 = vmatpush.msra.mxu0 0.0
          %332 = vmatpush.msra.mxu0 0.0
          %333 = vmatpush.msra.mxu0 0.0
          %334 = vmatpush.msra.mxu0 0.0
          %335 = vmatpush.msra.mxu0 0.0
          %336 = vmatpush.msra.mxu0 0.0
          %337 = vmatpush.msra.mxu0 0.0
          %338 = vmatpush.msra.mxu0 %v325
          %339 = vmatpush.msra.mxu0 %v324
          %340 = vmatpush.msra.mxu0 %v323
          %341 = vmatpush.msra.mxu0 %v322
          %342 = vmatmul.f32.gmra.mxu0 %v300
          %v343 = vpop.f32.mrf.mxu0
          %v344 = vadd.f32 0.0, %v343
          %345 = vdwg.mxu0
          %346 = vst.msk [vmem:[#allocation2] sm:$0xff] %vm298, %v320
          %347 = vst.msk [vmem:[#allocation3] sm:$0xff] %vm298, %v344
          %349 = vrot.lane.b32.xlu0 %v320, 96
          %v350 = vpop.permute.xlu0 %349
          %s352 = scalar_lea.vmem [#allocation2], 8
          %353 = vst.msk [vmem:[%s352] sm:$0xff] %vm298, %v350
          %355 = vrot.lane.b32.xlu0 %v344, 96
          %v356 = vpop.permute.xlu0 %355
          %s358 = scalar_lea.vmem [#allocation3], 8
          %359 = vst.msk [vmem:[%s358] sm:$0xff] %vm298, %v356
          %360 = vrot.lane.b32.xlu0 %v320, 64
          %v361 = vpop.permute.xlu0 %360
          %s363 = scalar_lea.vmem [#allocation2], 16
          %364 = vst.msk [vmem:[%s363] sm:$0xff] %vm298, %v361
          %365 = vrot.lane.b32.xlu0 %v344, 64
          %v366 = vpop.permute.xlu0 %365
          %s368 = scalar_lea.vmem [#allocation3], 16
          %369 = vst.msk [vmem:[%s368] sm:$0xff] %vm298, %v366
          %370 = vrot.lane.b32.xlu0 %v320, 32
          %v371 = vpop.permute.xlu0 %370
          %s373 = scalar_lea.vmem [#allocation2], 24
          %374 = vst.msk [vmem:[%s373] sm:$0xff] %vm298, %v371
          %375 = vrot.lane.b32.xlu0 %v344, 32
          %v376 = vpop.permute.xlu0 %375
          %s378 = scalar_lea.vmem [#allocation3], 24
          %379 = vst.msk [vmem:[%s378] sm:$0xff] %vm298, %v376
        $region48: #{tpu_custom_call.1} parent=43 // pred_fallthru
          _
        %v380 = vld [vmem:[%s288] sm:$0xff]
        %v381 = vld [vmem:[%s2] sm:$0xff]
        %v382 = vld [vmem:[%s2 + $0x8] sm:$0xff]
        %v383 = vld [vmem:[%s2 + $0x10] sm:$0xff]
        %v384 = vld [vmem:[%s2 + $0x18] sm:$0xff]
        %vm385 = vcmask 261120
        %v387 = vsel %vm385, %v380, 0
        %389 = vmatpush.msra.mxu0 0.0
        %390 = vmatpush.msra.mxu0 0.0
        %391 = vmatpush.msra.mxu0 0.0
        %392 = vmatpush.msra.mxu0 0.0
        %393 = vmatpush.msra.mxu0 0.0
        %394 = vmatpush.msra.mxu0 0.0
        %395 = vmatpush.msra.mxu0 0.0
        %396 = vmatpush.msra.mxu0 0.0
        %397 = vmatpush.msra.mxu0 0.0
        %398 = vmatpush.msra.mxu0 0.0
        %399 = vmatpush.msra.mxu0 0.0
        %400 = vmatpush.msra.mxu0 0.0
        %401 = vmatpush.msra.mxu0 %v384
        %402 = vmatpush.msra.mxu0 %v383
        %403 = vmatpush.msra.mxu0 %v382
        %404 = vmatpush.msra.mxu0 %v381
        %405 = vmatmul.f32.gmra.mxu0 %v387
        %v406 = vpop.f32.mrf.mxu0
        %v407 = vadd.f32 0.0, %v406
        %408 = vdwg.mxu0
        %v409 = vld [vmem:[#allocation2] sm:$0xff]
        %v410 = vld [vmem:[#allocation3] sm:$0xff]
        %v412 = vsel %vm385, %v407, 0
        %v415 = vsel %vm385, %v409, 0
        %417 = vmatpush.xpose.msra.mxu0 0.0
        %418 = vmatpush.xpose.msra.mxu0 0.0
        %419 = vmatpush.xpose.msra.mxu0 0.0
        %420 = vmatpush.xpose.msra.mxu0 0.0
        %421 = vmatpush.xpose.msra.mxu0 0.0
        %422 = vmatpush.xpose.msra.mxu0 0.0
        %423 = vmatpush.xpose.msra.mxu0 0.0
        %424 = vmatpush.xpose.msra.mxu0 0.0
        %425 = vmatpush.xpose.msra.mxu0 0.0
        %426 = vmatpush.xpose.msra.mxu0 0.0
        %427 = vmatpush.xpose.msra.mxu0 0.0
        %428 = vmatpush.xpose.msra.mxu0 0.0
        %429 = vmatpush.xpose.msra.mxu0 0.0
        %430 = vmatpush.xpose.msra.mxu0 0.0
        %431 = vmatpush.xpose.msra.mxu0 0.0
        %432 = vmatpush.xpose.msra.mxu0 %v415
        %433 = vmatmul.f32.gmra.mxu0 %v412
        %v434 = vpop.f32.mrf.mxu0
        %v435 = vadd.f32 0.0, %v434
        %436 = vdwg.mxu0
        %vm437 = vcmask 64512
        %v438 = vsel %vm437, %v435, -inf
        %439 = vmax.xlane.f32.xlu0 %v438
        %v440 = vpop.xlane.xlu0 %439
        %v441 = vsub.f32 %v435, %v440
        %v442 = vmul.f32 %v441, 1.442695
        %v443 = vpow.pop %v442
        %v444 = vsel %vm437, %v443, 0.0
        %445 = vadd.xlane.f32.xlu0 %v444
        %v446 = vpop.xlane.xlu0 %445
        %v448 = vsel %vm437, %v443, 0
        %450 = vmatpush.msra.mxu0 0.0
        %451 = vmatpush.msra.mxu0 0.0
        %452 = vmatpush.msra.mxu0 0.0
        %453 = vmatpush.msra.mxu0 0.0
        %454 = vmatpush.msra.mxu0 0.0
        %455 = vmatpush.msra.mxu0 0.0
        %456 = vmatpush.msra.mxu0 0.0
        %457 = vmatpush.msra.mxu0 0.0
        %458 = vmatpush.msra.mxu0 0.0
        %459 = vmatpush.msra.mxu0 0.0
        %460 = vmatpush.msra.mxu0 0.0
        %461 = vmatpush.msra.mxu0 0.0
        %462 = vmatpush.msra.mxu0 0.0
        %463 = vmatpush.msra.mxu0 0.0
        %464 = vmatpush.msra.mxu0 0.0
        %465 = vmatpush.msra.mxu0 %v410
        %466 = vmatmul.f32.gmra.mxu0 %v448
        %v467 = vpop.f32.mrf.mxu0
        %v468 = vadd.f32 0.0, %v467
        %469 = vdwg.mxu0
        %v470 = vrcp.pop %v446
        %v471 = vmul.f32 %v468, %v470
        %s472 = scalar_lea.vmem [#allocation2], 8
        %v473 = vld [vmem:[%s472] sm:$0xff]
        %s474 = scalar_lea.vmem [#allocation3], 8
        %v475 = vld [vmem:[%s474] sm:$0xff]
        %476 = vrot.lane.b32.xlu0 %v407, 96
        %v477 = vpop.permute.xlu0 %476
        %v478 = vsel %vm385, %v477, 0
        %v481 = vsel %vm385, %v473, 0
        %483 = vmatpush.xpose.msra.mxu0 0.0
        %484 = vmatpush.xpose.msra.mxu0 0.0
        %485 = vmatpush.xpose.msra.mxu0 0.0
        %486 = vmatpush.xpose.msra.mxu0 0.0
        %487 = vmatpush.xpose.msra.mxu0 0.0
        %488 = vmatpush.xpose.msra.mxu0 0.0
        %489 = vmatpush.xpose.msra.mxu0 0.0
        %490 = vmatpush.xpose.msra.mxu0 0.0
        %491 = vmatpush.xpose.msra.mxu0 0.0
        %492 = vmatpush.xpose.msra.mxu0 0.0
        %493 = vmatpush.xpose.msra.mxu0 0.0
        %494 = vmatpush.xpose.msra.mxu0 0.0
        %495 = vmatpush.xpose.msra.mxu0 0.0
        %496 = vmatpush.xpose.msra.mxu0 0.0
        %497 = vmatpush.xpose.msra.mxu0 0.0
        %498 = vmatpush.xpose.msra.mxu0 %v481
        %499 = vmatmul.f32.gmra.mxu0 %v478
        %v500 = vpop.f32.mrf.mxu0
        %v501 = vadd.f32 0.0, %v500
        %502 = vdwg.mxu0
        %v503 = vsel %vm437, %v501, -inf
        %504 = vmax.xlane.f32.xlu0 %v503
        %v505 = vpop.xlane.xlu0 %504
        %v506 = vsub.f32 %v501, %v505
        %v507 = vmul.f32 %v506, 1.442695
        %v508 = vpow.pop %v507
        %v509 = vsel %vm437, %v508, 0.0
        %510 = vadd.xlane.f32.xlu0 %v509
        %v511 = vpop.xlane.xlu0 %510
        %v513 = vsel %vm437, %v508, 0
        %515 = vmatpush.msra.mxu0 0.0
        %516 = vmatpush.msra.mxu0 0.0
        %517 = vmatpush.msra.mxu0 0.0
        %518 = vmatpush.msra.mxu0 0.0
        %519 = vmatpush.msra.mxu0 0.0
        %520 = vmatpush.msra.mxu0 0.0
        %521 = vmatpush.msra.mxu0 0.0
        %522 = vmatpush.msra.mxu0 0.0
        %523 = vmatpush.msra.mxu0 0.0
        %524 = vmatpush.msra.mxu0 0.0
        %525 = vmatpush.msra.mxu0 0.0
        %526 = vmatpush.msra.mxu0 0.0
        %527 = vmatpush.msra.mxu0 0.0
        %528 = vmatpush.msra.mxu0 0.0
        %529 = vmatpush.msra.mxu0 0.0
        %530 = vmatpush.msra.mxu0 %v475
        %531 = vmatmul.f32.gmra.mxu0 %v513
        %v532 = vpop.f32.mrf.mxu0
        %v533 = vadd.f32 0.0, %v532
        %534 = vdwg.mxu0
        %v535 = vrcp.pop %v511
        %v536 = vmul.f32 %v533, %v535
        %s537 = scalar_lea.vmem [#allocation2], 16
        %v538 = vld [vmem:[%s537] sm:$0xff]
        %s539 = scalar_lea.vmem [#allocation3], 16
        %v540 = vld [vmem:[%s539] sm:$0xff]
        %541 = vrot.lane.b32.xlu0 %v407, 64
        %v542 = vpop.permute.xlu0 %541
        %v543 = vsel %vm385, %v542, 0
        %v546 = vsel %vm385, %v538, 0
        %548 = vmatpush.xpose.msra.mxu0 0.0
        %549 = vmatpush.xpose.msra.mxu0 0.0
        %550 = vmatpush.xpose.msra.mxu0 0.0
        %551 = vmatpush.xpose.msra.mxu0 0.0
        %552 = vmatpush.xpose.msra.mxu0 0.0
        %553 = vmatpush.xpose.msra.mxu0 0.0
        %554 = vmatpush.xpose.msra.mxu0 0.0
        %555 = vmatpush.xpose.msra.mxu0 0.0
        %556 = vmatpush.xpose.msra.mxu0 0.0
        %557 = vmatpush.xpose.msra.mxu0 0.0
        %558 = vmatpush.xpose.msra.mxu0 0.0
        %559 = vmatpush.xpose.msra.mxu0 0.0
        %560 = vmatpush.xpose.msra.mxu0 0.0
        %561 = vmatpush.xpose.msra.mxu0 0.0
        %562 = vmatpush.xpose.msra.mxu0 0.0
        %563 = vmatpush.xpose.msra.mxu0 %v546
        %564 = vmatmul.f32.gmra.mxu0 %v543
        %v565 = vpop.f32.mrf.mxu0
        %v566 = vadd.f32 0.0, %v565
        %567 = vdwg.mxu0
        %v568 = vsel %vm437, %v566, -inf
        %569 = vmax.xlane.f32.xlu0 %v568
        %v570 = vpop.xlane.xlu0 %569
        %v571 = vsub.f32 %v566, %v570
        %v572 = vmul.f32 %v571, 1.442695
        %v573 = vpow.pop %v572
        %v574 = vsel %vm437, %v573, 0.0
        %575 = vadd.xlane.f32.xlu0 %v574
        %v576 = vpop.xlane.xlu0 %575
        %v578 = vsel %vm437, %v573, 0
        %580 = vmatpush.msra.mxu0 0.0
        %581 = vmatpush.msra.mxu0 0.0
        %582 = vmatpush.msra.mxu0 0.0
        %583 = vmatpush.msra.mxu0 0.0
        %584 = vmatpush.msra.mxu0 0.0
        %585 = vmatpush.msra.mxu0 0.0
        %586 = vmatpush.msra.mxu0 0.0
        %587 = vmatpush.msra.mxu0 0.0
        %588 = vmatpush.msra.mxu0 0.0
        %589 = vmatpush.msra.mxu0 0.0
        %590 = vmatpush.msra.mxu0 0.0
        %591 = vmatpush.msra.mxu0 0.0
        %592 = vmatpush.msra.mxu0 0.0
        %593 = vmatpush.msra.mxu0 0.0
        %594 = vmatpush.msra.mxu0 0.0
        %595 = vmatpush.msra.mxu0 %v540
        %596 = vmatmul.f32.gmra.mxu0 %v578
        %v597 = vpop.f32.mrf.mxu0
        %v598 = vadd.f32 0.0, %v597
        %599 = vdwg.mxu0
        %v600 = vrcp.pop %v576
        %v601 = vmul.f32 %v598, %v600
        %s602 = scalar_lea.vmem [#allocation2], 24
        %v603 = vld [vmem:[%s602] sm:$0xff]
        %s604 = scalar_lea.vmem [#allocation3], 24
        %v605 = vld [vmem:[%s604] sm:$0xff]
        %606 = vrot.lane.b32.xlu0 %v407, 32
        %v607 = vpop.permute.xlu0 %606
        %v608 = vsel %vm385, %v607, 0
        %v611 = vsel %vm385, %v603, 0
        %613 = vmatpush.xpose.msra.mxu0 0.0
        %614 = vmatpush.xpose.msra.mxu0 0.0
        %615 = vmatpush.xpose.msra.mxu0 0.0
        %616 = vmatpush.xpose.msra.mxu0 0.0
        %617 = vmatpush.xpose.msra.mxu0 0.0
        %618 = vmatpush.xpose.msra.mxu0 0.0
        %619 = vmatpush.xpose.msra.mxu0 0.0
        %620 = vmatpush.xpose.msra.mxu0 0.0
        %621 = vmatpush.xpose.msra.mxu0 0.0
        %622 = vmatpush.xpose.msra.mxu0 0.0
        %623 = vmatpush.xpose.msra.mxu0 0.0
        %624 = vmatpush.xpose.msra.mxu0 0.0
        %625 = vmatpush.xpose.msra.mxu0 0.0
        %626 = vmatpush.xpose.msra.mxu0 0.0
        %627 = vmatpush.xpose.msra.mxu0 0.0
        %628 = vmatpush.xpose.msra.mxu0 %v611
        %629 = vmatmul.f32.gmra.mxu0 %v608
        %v630 = vpop.f32.mrf.mxu0
        %v631 = vadd.f32 0.0, %v630
        %632 = vdwg.mxu0
        %v633 = vsel %vm437, %v631, -inf
        %634 = vmax.xlane.f32.xlu0 %v633
        %v635 = vpop.xlane.xlu0 %634
        %v636 = vsub.f32 %v631, %v635
        %v637 = vmul.f32 %v636, 1.442695
        %v638 = vpow.pop %v637
        %v639 = vsel %vm437, %v638, 0.0
        %640 = vadd.xlane.f32.xlu0 %v639
        %v641 = vpop.xlane.xlu0 %640
        %v643 = vsel %vm437, %v638, 0
        %645 = vmatpush.msra.mxu0 0.0
        %646 = vmatpush.msra.mxu0 0.0
        %647 = vmatpush.msra.mxu0 0.0
        %648 = vmatpush.msra.mxu0 0.0
        %649 = vmatpush.msra.mxu0 0.0
        %650 = vmatpush.msra.mxu0 0.0
        %651 = vmatpush.msra.mxu0 0.0
        %652 = vmatpush.msra.mxu0 0.0
        %653 = vmatpush.msra.mxu0 0.0
        %654 = vmatpush.msra.mxu0 0.0
        %655 = vmatpush.msra.mxu0 0.0
        %656 = vmatpush.msra.mxu0 0.0
        %657 = vmatpush.msra.mxu0 0.0
        %658 = vmatpush.msra.mxu0 0.0
        %659 = vmatpush.msra.mxu0 0.0
        %660 = vmatpush.msra.mxu0 %v605
        %661 = vmatmul.f32.gmra.mxu0 %v643
        %v662 = vpop.f32.mrf.mxu0
        %v663 = vadd.f32 0.0, %v662
        %664 = vdwg.mxu0
        %v665 = vrcp.pop %v641
        %v666 = vmul.f32 %v663, %v665
        %668 = vrot.lane.b32.xlu0 %v536, 32
        %v669 = vpop.permute.xlu0 %668
        %672 = vrot.lane.b32.xlu0 %v601, 64
        %v673 = vpop.permute.xlu0 %672
        %676 = vrot.lane.b32.xlu0 %v666, 96
        %v677 = vpop.permute.xlu0 %676
        %v679 = vsel %vm385, %v471, %v669
        %vm680 = vcmask 523264
        %v681 = vsel %vm680, %v679, %v673
        %vm682 = vcmask 785408
        %v683 = vsel %vm682, %v681, %v677
        %v684 = vld [vmem:[%s5] sm:$0xff]
        %v685 = vld [vmem:[%s5 + $0x8] sm:$0xff]
        %v686 = vld [vmem:[%s5 + $0x10] sm:$0xff]
        %v687 = vld [vmem:[%s5 + $0x18] sm:$0xff]
        %v688 = vld [vmem:[%s5 + $0x20] sm:$0xff]
        %v689 = vld [vmem:[%s5 + $0x28] sm:$0xff]
        %v690 = vld [vmem:[%s5 + $0x30] sm:$0xff]
        %v691 = vld [vmem:[%s5 + $0x38] sm:$0xff]
        %v692 = vld [vmem:[%s5 + $0x40] sm:$0xff]
        %v693 = vld [vmem:[%s5 + $0x48] sm:$0xff]
        %v694 = vld [vmem:[%s5 + $0x50] sm:$0xff]
        %v695 = vld [vmem:[%s5 + $0x58] sm:$0xff]
        %v696 = vld [vmem:[%s5 + $0x60] sm:$0xff]
        %v697 = vld [vmem:[%s5 + $0x68] sm:$0xff]
        %v698 = vld [vmem:[%s5 + $0x70] sm:$0xff]
        %v699 = vld [vmem:[%s5 + $0x78] sm:$0xff]
        %700 = vmatpush.msra.mxu0 %v699
        %701 = vmatpush.msra.mxu0 %v698
        %702 = vmatpush.msra.mxu0 %v697
        %703 = vmatpush.msra.mxu0 %v696
        %704 = vmatpush.msra.mxu0 %v695
        %705 = vmatpush.msra.mxu0 %v694
        %706 = vmatpush.msra.mxu0 %v693
        %707 = vmatpush.msra.mxu0 %v692
        %708 = vmatpush.msra.mxu0 %v691
        %709 = vmatpush.msra.mxu0 %v690
        %710 = vmatpush.msra.mxu0 %v689
        %711 = vmatpush.msra.mxu0 %v688
        %712 = vmatpush.msra.mxu0 %v687
        %713 = vmatpush.msra.mxu0 %v686
        %714 = vmatpush.msra.mxu0 %v685
        %715 = vmatpush.msra.mxu0 %v684
        %716 = vmatmul.f32.gmra.mxu0 %v683
        %v717 = vpop.f32.mrf.mxu0
        %v718 = vadd.f32 0.0, %v717
        %719 = vdwg.mxu0
        %720 = vst.msk [vmem:[%s277] sm:$0xff] %vm385, %v718
        %s721 = sand.u32 %s180, 1
        %s722 = scalar_lea.sflag [#allocation5], %s721
        %s723 = sand.u32 %s180, 1
        %s724 = smul.addr %s723, 8
        %s725 = scalar_lea.vmem [#allocation4], %s724
        // Predicated region
        $region49: #{tpu_custom_call.1} parent=43 // pred_check
          %p726 = pneg %p190
        $region50: #{tpu_custom_call.1} parent=43 // pred_check_branch
          %728 = sbr.rel (%p726) target = $region52
        $region51: #{tpu_custom_call.1} parent=43 // pred_region
          %730 = vsyncadd %s722, 0
          %s731 = sadd.s32 %s25, %s24
          %s732 = smul.addr %s731, 8
          %s733 = scalar_lea.hbm %s6, %s732
          %s735 = sshll.u32 %s725, 4
          %s736 = int_to_ptr.vmem [resolvable:$true] %s735
          %s737 = sshll.u32 %s733, 4
          %s738 = int_to_ptr.hbm [resolvable:$true] %s737
          %740 = dma.vmem_to_hbm [thread:$0]  %s736, 128, %s738, %s722
        $region52: #{tpu_custom_call.1} parent=43 // pred_fallthru
          _
      $region44: #{tpu_custom_call.1} parent=5 // pred_fallthru
        _
      %p741 = scmp.le.s32.totalorder 2, %s15
      // Predicated region
      $region53: #{tpu_custom_call.1} parent=5 // pred_check
        %p742 = pneg %p741
      $region54: #{tpu_custom_call.1} parent=5 // pred_check_branch
        %744 = sbr.rel (%p742) target = $region56
      $region55: #{tpu_custom_call.1} parent=5 // pred_region
        %s745 = ssub.s32 %s15, 2
        // Predicated region
        $region57: #{tpu_custom_call.1} parent=55 // pred_check
          %p746 = pneg %p196
        $region58: #{tpu_custom_call.1} parent=55 // pred_check_branch
          %748 = sbr.rel (%p746) target = $region60
        $region59: #{tpu_custom_call.1} parent=55 // pred_region
          %s749 = sand.u32 %s181, 1
          %s750 = scalar_lea.sflag [#allocation5], %s749
          %s751 = sand.u32 %s181, 1
          %s752 = smul.addr %s751, 8
          %s753 = scalar_lea.vmem [#allocation4], %s752
          %755 = dma.done %s750, 128
        $region60: #{tpu_custom_call.1} parent=55 // pred_fallthru
          _
      $region56: #{tpu_custom_call.1} parent=5 // pred_fallthru
        _
    $region6: #{tpu_custom_call.1} parent=1 // loop_footer
      %s19 = sadd.s32 1, %s15
    $region7: #{tpu_custom_call.1} parent=1 // loop_footer_branch
      %14 = sbr.rel target = $region3
    $region8: #{tpu_custom_call.1} parent=1 // loop_exit
      _
    %756 = vsyncpa [#allocation5], 1
    %s757 = scalar_lea.sflag [#allocation5], 1
    %758 = vsyncpa %s757, 1

</llo_original>
